<compile_context>
chip_gen: v6e
topology: v6e:2x2x1
jax: 0.10.0
libtpu: 0.0.40
codegen_flags: <defaults>
</compile_context>

<pallas_src>
import functools
import math

import jax
import jax.numpy as jnp
from jax import lax
from jax.experimental import pallas as pl
from jax.experimental.pallas import tpu as pltpu

_LOG10_SCALE = 10.0 / math.log(10.0)  # 10*log10(x) == _LOG10_SCALE * ln(x)


def _gamma_loss_kernel(pm_ref, pp_ref, tm_ref, tp_ref, out_ref, *,
                       batch, freqs, tile_rows,
                       mag_smooth_weight, phase_smooth_weight, lane_aligned):
    """Processes one (tile_rows, freqs) batch tile; accumulates into out_ref."""
    i = pl.program_id(0)

    pred_mag_lin = pm_ref[...].astype(jnp.float32)
    pred_phase = pp_ref[...].astype(jnp.float32)
    tgt_mag = tm_ref[...].astype(jnp.float32)
    tgt_phase = tp_ref[...].astype(jnp.float32)

    # Rows past `batch` in the padded trailing tile hold unspecified data;
    # build a (TB,1) validity mask once and select the contributions out at
    # the end (select, so garbage -> NaN never propagates into the sum).
    row_mask = None
    if batch % tile_rows != 0:
        row = lax.broadcasted_iota(jnp.int32, (tile_rows, 1), 0) + i * tile_rows
        row_mask = row < batch

    # dB conversion: one EUP log + one VALU scale.
    pred_mag = jnp.float32(_LOG10_SCALE) * jnp.log(pred_mag_lin)

    # HuberLoss(delta=1), branch-free: c = min(|d|,1); c*(|d| - c/2).
    d = pred_mag - tgt_mag
    ad = jnp.abs(d)
    c = jnp.minimum(ad, 1.0)
    huber = c * (ad - 0.5 * c)

    # CircularLoss elementwise term.
    one_minus_cos = 1.0 - jnp.cos(pred_phase - tgt_phase)

    # Both "mean" terms share the same global denominator -> fold and fuse.
    inv_nf = 1.0 / float(batch * freqs)
    combined = jnp.float32(inv_nf) * (huber + one_minus_cos)

    extra = None
    if mag_smooth_weight != 0.0 or phase_smooth_weight != 0.0:
        pi = jnp.float32(math.pi)
        inv_ns = 1.0 / float(batch * (freqs - 2))
        if lane_aligned:
            # XLU rolls instead of lane-shifted slices; both weighted stencils
            # are summed first and masked once (the two wrap lanes), then join
            # the single fused reduction.
            interior = lax.broadcasted_iota(
                jnp.int32, (1, freqs), 1) < (freqs - 2)
            smooth = None
            if mag_smooth_weight != 0.0:
                d2m = (pltpu.roll(pred_mag, shift=freqs - 2, axis=1)
                       - 2.0 * pltpu.roll(pred_mag, shift=freqs - 1, axis=1)
                       + pred_mag)
                smooth = jnp.float32(mag_smooth_weight * inv_ns) * jnp.abs(d2m)
            if phase_smooth_weight != 0.0:
                cd = pltpu.roll(pred_phase, shift=freqs - 1, axis=1) - pred_phase
                cd = jnp.where(jnp.abs(cd) > pi, 2.0 * pi - jnp.abs(cd), cd)
                cd2 = pltpu.roll(cd, shift=freqs - 1, axis=1) - cd
                cd2 = jnp.where(jnp.abs(cd2) > pi, 2.0 * pi - jnp.abs(cd2), cd2)
                sp = jnp.float32(phase_smooth_weight * inv_ns) * jnp.abs(cd2)
                smooth = sp if smooth is None else smooth + sp
            combined += jnp.where(interior, smooth, 0.0)
        else:
            # Non-128-multiple F: sliced stencils with their own partial sums
            # (padded rows masked per-term before the reduction).
            extra = jnp.zeros((1, 1), jnp.float32)
            if mag_smooth_weight != 0.0:
                d2m = jnp.abs(pred_mag[:, 2:] - 2.0 * pred_mag[:, 1:-1]
                              + pred_mag[:, :-2])
                if row_mask is not None:
                    d2m = jnp.where(row_mask, d2m, 0.0)
                extra += (jnp.float32(mag_smooth_weight * inv_ns)
                          * jnp.sum(d2m, keepdims=True))
            if phase_smooth_weight != 0.0:
                cd = pred_phase[:, 1:] - pred_phase[:, :-1]
                cd = jnp.where(jnp.abs(cd) > pi, 2.0 * pi - jnp.abs(cd), cd)
                cd2 = cd[:, 1:] - cd[:, :-1]
                cd2 = jnp.where(jnp.abs(cd2) > pi, 2.0 * pi - jnp.abs(cd2), cd2)
                cd2 = jnp.abs(cd2)
                if row_mask is not None:
                    cd2 = jnp.where(row_mask, cd2, 0.0)
                extra += (jnp.float32(phase_smooth_weight * inv_ns)
                          * jnp.sum(cd2, keepdims=True))

    if row_mask is not None:
        combined = jnp.where(row_mask, combined, 0.0)

    partial = jnp.sum(combined, keepdims=True)  # single fused reduction -> (1,1)
    if extra is not None:
        partial = partial + extra

    @pl.when(i == 0)
    def _init():
        out_ref[...] = jnp.zeros_like(out_ref)

    out_ref[...] += partial


def _pick_tile_rows(batch, freqs):
    """Rows per grid step: keep 4 input streams x 2 pipeline buffers under
    ~12 MiB so tiles + vector temporaries fit VMEM on every TPU generation
    (v7x has only 64 MiB / TensorCore)."""
    budget_bytes = 12 * 1024 * 1024
    cap = budget_bytes // (4 * 2 * freqs * 4)
    cap = max(8, (cap // 8) * 8)
    return batch if batch <= cap else cap


def gamma_loss_dB(pred, target, mag_smooth_weight=0.0, phase_smooth_weight=0.0,
                  tile_rows=None):
    assert pred.shape == target.shape and pred.ndim == 2
    batch, chans = pred.shape
    assert chans % 2 == 0
    freqs = chans // 2
    mag_w = float(mag_smooth_weight)
    phase_w = float(phase_smooth_weight)
    if (mag_w != 0.0 or phase_w != 0.0) and freqs < 3:
        raise ValueError("smoothness terms need at least 3 frequency bins")

    tb = _pick_tile_rows(batch, freqs) if tile_rows is None else int(tile_rows)
    tb = min(tb, batch)
    grid = (pl.cdiv(batch, tb),)

    lane_aligned = (freqs % 128 == 0)

    kernel = functools.partial(
        _gamma_loss_kernel, batch=batch, freqs=freqs, tile_rows=tb,
        mag_smooth_weight=mag_w, phase_smooth_weight=phase_w,
        lane_aligned=lane_aligned)

    if lane_aligned:
        # Zero-copy: pass each tensor twice; column-block 0 is the magnitude
        # half, column-block 1 the phase half.  Each half lands lane-aligned
        # (starting at lane 0) in its own VMEM buffer.
        mag_spec = pl.BlockSpec((tb, freqs), lambda i: (i, 0))
        phase_spec = pl.BlockSpec((tb, freqs), lambda i: (i, 1))
        in_specs = [mag_spec, phase_spec, mag_spec, phase_spec]
        args = (pred, pred, target, target)
    else:
        # Fallback: split halves in the wrapper so every kernel block still
        # starts at lane 0 with a full-width last dim (valid for any F).
        half_spec = pl.BlockSpec((tb, freqs), lambda i: (i, 0))
        in_specs = [half_spec, half_spec, half_spec, half_spec]
        args = (pred[:, :freqs], pred[:, freqs:],
                target[:, :freqs], target[:, freqs:])

    out = pl.pallas_call(
        kernel,
        out_shape=jax.ShapeDtypeStruct((1, 1), jnp.float32),
        grid=grid,
        in_specs=in_specs,
        out_specs=pl.BlockSpec((1, 1), lambda i: (0, 0)),
        compiler_params=pltpu.CompilerParams(
            dimension_semantics=("arbitrary",),
            vmem_limit_bytes=48 * 1024 * 1024),
    )(*args)
    return out[0, 0]


def _reference(pred, target, mag_w, phase_w):
    # Pure-JAX reference mirroring the PyTorch module exactly.
    half = pred.shape[1] // 2
    pred_mag = 10.0 * jnp.log10(pred[:, :half])
    pred_phase = pred[:, half:]
    tgt_mag = target[:, :half]
    tgt_phase = target[:, half:]

    d = pred_mag - tgt_mag
    ad = jnp.abs(d)
    mag_loss = jnp.mean(jnp.where(ad < 1.0, 0.5 * d * d, ad - 0.5))
    phase_loss = jnp.mean(1.0 - jnp.cos(pred_phase - tgt_phase))

    smooth_mag = mag_w * jnp.mean(
        jnp.abs(pred_mag[:, 2:] - 2.0 * pred_mag[:, 1:-1] + pred_mag[:, :-2]))

    pi = jnp.pi
    cd = pred_phase[:, 1:] - pred_phase[:, :-1]
    cd = jnp.where(jnp.abs(cd) > pi, 2.0 * pi - jnp.abs(cd), cd)
    cd2 = cd[:, 1:] - cd[:, :-1]
    cd2 = jnp.where(jnp.abs(cd2) > pi, 2.0 * pi - jnp.abs(cd2), cd2)
    smooth_phase = phase_w * jnp.mean(jnp.abs(cd2))

    return mag_loss + phase_loss + smooth_mag + smooth_phase


def _make_inputs(key, batch, freqs):
    k1, k2, k3, k4 = jax.random.split(key, 4)
    pred_mag_lin = jax.random.uniform(k1, (batch, freqs), jnp.float32,
                                      minval=0.01, maxval=1.0)
    pred_phase = jax.random.uniform(k2, (batch, freqs), jnp.float32,
                                    minval=-jnp.pi, maxval=jnp.pi)
    tgt_mag_db = jax.random.uniform(k3, (batch, freqs), jnp.float32,
                                    minval=-20.0, maxval=0.0)
    tgt_phase = jax.random.uniform(k4, (batch, freqs), jnp.float32,
                                   minval=-jnp.pi, maxval=jnp.pi)
    pred = jnp.concatenate([pred_mag_lin, pred_phase], axis=1)
    target = jnp.concatenate([tgt_mag_db, tgt_phase], axis=1)
    return pred, target


if __name__ == "__main__":
    key = jax.random.PRNGKey(0)
    k_a, k_b = jax.random.split(key)

    # Case 1: lane-aligned F (128), single tile; with and without the
    # smoothness terms (the latter exercises the trace-time skip path).
    pred, target = _make_inputs(k_a, 8, 128)
    for mag_w, phase_w in ((0.1, 0.05), (0.0, 0.0)):
        loss = jax.block_until_ready(gamma_loss_dB(pred, target, mag_w, phase_w))
        ref = _reference(pred, target, mag_w, phase_w)
        assert jnp.allclose(loss, ref, rtol=1e-4, atol=1e-4), \
            (mag_w, phase_w, loss, ref)

    # Case 2: unaligned F (96) + uneven batch tiling (tail tile row-masked,
    # multi-step accumulation across the grid), smoothness via sliced path.
    pred2, target2 = _make_inputs(k_b, 20, 96)
    for mag_w, phase_w in ((0.0, 0.0), (0.2, 0.1)):
        loss2 = jax.block_until_ready(
            gamma_loss_dB(pred2, target2, mag_w, phase_w, tile_rows=8))
        ref2 = _reference(pred2, target2, mag_w, phase_w)
        assert jnp.allclose(loss2, ref2, rtol=1e-4, atol=1e-4), (loss2, ref2)

    print("KERNEL_OK")
</pallas_src>

<mosaic_0001>
module attributes {stable_mosaic.version = 11 : i64} {
  func.func @_gamma_loss_kernel(%arg0: i32, %arg1: memref<8x128xf32, #tpu.memory_space<vmem>>, %arg2: memref<8x128xf32, #tpu.memory_space<vmem>>, %arg3: memref<8x128xf32, #tpu.memory_space<vmem>>, %arg4: memref<8x128xf32, #tpu.memory_space<vmem>>, %arg5: memref<1x1xf32, #tpu.memory_space<vmem>>) attributes {dimension_semantics = [#tpu.dimension_semantics<arbitrary>], iteration_bounds = array<i64: 1>, scalar_prefetch = 0 : i64, scratch_operands = 0 : i64, tpu.core_type = #tpu.core_type<tc>, window_params = [{transform_indices = @transform_0, window_bounds = array<i64: 8, 128>}, {transform_indices = @transform_1, window_bounds = array<i64: 8, 128>}, {transform_indices = @transform_2, window_bounds = array<i64: 8, 128>}, {transform_indices = @transform_3, window_bounds = array<i64: 8, 128>}, {pipeline_mode = #tpu.pipeline_mode<synchronous>, transform_indices = @transform_4, window_bounds = array<i64: 1, 1>}]} {
    %c0 = arith.constant 0 : index
    %c0_0 = arith.constant 0 : index
    %0 = vector.load %arg1[%c0, %c0_0] : memref<8x128xf32, #tpu.memory_space<vmem>>, vector<8x128xf32>
    %c0_1 = arith.constant 0 : index
    %c0_2 = arith.constant 0 : index
    %1 = vector.load %arg2[%c0_1, %c0_2] : memref<8x128xf32, #tpu.memory_space<vmem>>, vector<8x128xf32>
    %c0_3 = arith.constant 0 : index
    %c0_4 = arith.constant 0 : index
    %2 = vector.load %arg3[%c0_3, %c0_4] : memref<8x128xf32, #tpu.memory_space<vmem>>, vector<8x128xf32>
    %c0_5 = arith.constant 0 : index
    %c0_6 = arith.constant 0 : index
    %3 = vector.load %arg4[%c0_5, %c0_6] : memref<8x128xf32, #tpu.memory_space<vmem>>, vector<8x128xf32>
    %4 = math.log %0 : vector<8x128xf32>
    %cst = arith.constant 4.34294462 : f32
    %5 = vector.broadcast %cst : f32 to vector<8x128xf32>
    %6 = arith.mulf %5, %4 : vector<8x128xf32>
    %7 = arith.subf %6, %2 : vector<8x128xf32>
    %8 = math.absf %7 : vector<8x128xf32>
    %cst_7 = arith.constant 1.000000e+00 : f32
    %9 = vector.broadcast %cst_7 : f32 to vector<8x128xf32>
    %10 = arith.minimumf %8, %9 : vector<8x128xf32>
    %cst_8 = arith.constant 5.000000e-01 : f32
    %11 = vector.broadcast %cst_8 : f32 to vector<8x128xf32>
    %12 = arith.mulf %11, %10 : vector<8x128xf32>
    %13 = arith.subf %8, %12 : vector<8x128xf32>
    %14 = arith.mulf %10, %13 : vector<8x128xf32>
    %15 = arith.subf %1, %3 : vector<8x128xf32>
    %16 = math.cos %15 : vector<8x128xf32>
    %cst_9 = arith.constant 1.000000e+00 : f32
    %17 = vector.broadcast %cst_9 : f32 to vector<8x128xf32>
    %18 = arith.subf %17, %16 : vector<8x128xf32>
    %19 = arith.addf %14, %18 : vector<8x128xf32>
    %cst_10 = arith.constant 9.765625E-4 : f32
    %20 = vector.broadcast %cst_10 : f32 to vector<8x128xf32>
    %21 = arith.mulf %20, %19 : vector<8x128xf32>
    %22 = tpu.iota {dimensions = array<i32: 1>} : vector<1x128xi32>
    %c126_i32 = arith.constant 126 : i32
    %23 = vector.broadcast %c126_i32 : i32 to vector<1x128xi32>
    %24 = arith.cmpi slt, %22, %23 : vector<1x128xi32>
    %c126_i32_11 = arith.constant 126 : i32
    %25 = tpu.dynamic_rotate %6 by %c126_i32_11 dim 1 : vector<8x128xf32>, i32 -> vector<8x128xf32>
    %c127_i32 = arith.constant 127 : i32
    %26 = tpu.dynamic_rotate %6 by %c127_i32 dim 1 : vector<8x128xf32>, i32 -> vector<8x128xf32>
    %cst_12 = arith.constant 2.000000e+00 : f32
    %27 = vector.broadcast %cst_12 : f32 to vector<8x128xf32>
    %28 = arith.mulf %27, %26 : vector<8x128xf32>
    %29 = arith.subf %25, %28 : vector<8x128xf32>
    %30 = arith.addf %29, %6 : vector<8x128xf32>
    %31 = math.absf %30 : vector<8x128xf32>
    %cst_13 = arith.constant 9.92063505E-5 : f32
    %32 = vector.broadcast %cst_13 : f32 to vector<8x128xf32>
    %33 = arith.mulf %32, %31 : vector<8x128xf32>
    %c127_i32_14 = arith.constant 127 : i32
    %34 = tpu.dynamic_rotate %1 by %c127_i32_14 dim 1 : vector<8x128xf32>, i32 -> vector<8x128xf32>
    %35 = arith.subf %34, %1 : vector<8x128xf32>
    %36 = math.absf %35 : vector<8x128xf32>
    %cst_15 = arith.constant 3.14159274 : f32
    %37 = vector.broadcast %cst_15 : f32 to vector<8x128xf32>
    %38 = arith.cmpf ogt, %36, %37 : vector<8x128xf32>
    %cst_16 = arith.constant 2.000000e+00 : f32
    %cst_17 = arith.constant 3.14159274 : f32
    %39 = arith.mulf %cst_16, %cst_17 : f32
    %40 = math.absf %35 : vector<8x128xf32>
    %41 = vector.broadcast %39 : f32 to vector<8x128xf32>
    %42 = arith.subf %41, %40 : vector<8x128xf32>
    %43 = arith.select %38, %42, %35 : vector<8x128xi1>, vector<8x128xf32>
    %c127_i32_18 = arith.constant 127 : i32
    %44 = tpu.dynamic_rotate %43 by %c127_i32_18 dim 1 : vector<8x128xf32>, i32 -> vector<8x128xf32>
    %45 = arith.subf %44, %43 : vector<8x128xf32>
    %46 = math.absf %45 : vector<8x128xf32>
    %cst_19 = arith.constant 3.14159274 : f32
    %47 = vector.broadcast %cst_19 : f32 to vector<8x128xf32>
    %48 = arith.cmpf ogt, %46, %47 : vector<8x128xf32>
    %cst_20 = arith.constant 2.000000e+00 : f32
    %cst_21 = arith.constant 3.14159274 : f32
    %49 = arith.mulf %cst_20, %cst_21 : f32
    %50 = math.absf %45 : vector<8x128xf32>
    %51 = vector.broadcast %49 : f32 to vector<8x128xf32>
    %52 = arith.subf %51, %50 : vector<8x128xf32>
    %53 = arith.select %48, %52, %45 : vector<8x128xi1>, vector<8x128xf32>
    %54 = math.absf %53 : vector<8x128xf32>
    %cst_22 = arith.constant 4.96031753E-5 : f32
    %55 = vector.broadcast %cst_22 : f32 to vector<8x128xf32>
    %56 = arith.mulf %55, %54 : vector<8x128xf32>
    %57 = arith.addf %33, %56 : vector<8x128xf32>
    %cst_23 = arith.constant 0.000000e+00 : f32
    %58 = vector.shape_cast %24 : vector<1x128xi1> to vector<1x128xi1>
    %59 = vector.broadcast %58 : vector<1x128xi1> to vector<8x128xi1>
    %60 = vector.broadcast %cst_23 : f32 to vector<8x128xf32>
    %61 = arith.select %59, %57, %60 : vector<8x128xi1>, vector<8x128xf32>
    %62 = arith.addf %21, %61 : vector<8x128xf32>
    %63 = vector.shape_cast %62 : vector<8x128xf32> to vector<1x8x128xf32>
    %cst_24 = arith.constant dense<0.000000e+00> : vector<1xf32>
    %64 = vector.multi_reduction <add>, %63, %cst_24 [1, 2] : vector<1x8x128xf32> to vector<1xf32>
    %65 = vector.shape_cast %64 : vector<1xf32> to vector<1x1x1xf32>
    %66 = vector.extract %65[0, 0, 0] : f32 from vector<1x1x1xf32>
    %67 = vector.broadcast %66 : f32 to vector<1x1xf32>
    %c0_i32 = arith.constant 0 : i32
    %68 = arith.cmpi eq, %arg0, %c0_i32 : i32
    %69 = arith.extui %68 : i1 to i32
    %c0_i32_25 = arith.constant 0 : i32
    %70 = arith.cmpi ne, %69, %c0_i32_25 : i32
    scf.if %70 {
      %cst_30 = arith.constant 0.000000e+00 : f32
      %74 = vector.broadcast %cst_30 : f32 to vector<1x1xf32>
      %c0_31 = arith.constant 0 : index
      %c0_32 = arith.constant 0 : index
      %75 = vector.load %arg5[%c0_31, %c0_32] : memref<1x1xf32, #tpu.memory_space<vmem>>, vector<1x1xf32>
      tpu.vector_store %arg5[%c0_31, %c0_32], %74 {strides = array<i32>} : memref<1x1xf32, #tpu.memory_space<vmem>>, vector<1x1xf32>,
    } else {
    }
    %c0_26 = arith.constant 0 : index
    %c0_27 = arith.constant 0 : index
    %71 = vector.load %arg5[%c0_26, %c0_27] : memref<1x1xf32, #tpu.memory_space<vmem>>, vector<1x1xf32>
    %72 = arith.addf %71, %67 : vector<1x1xf32>
    %c0_28 = arith.constant 0 : index
    %c0_29 = arith.constant 0 : index
    %73 = vector.load %arg5[%c0_28, %c0_29] : memref<1x1xf32, #tpu.memory_space<vmem>>, vector<1x1xf32>
    tpu.vector_store %arg5[%c0_28, %c0_29], %72 {strides = array<i32>} : memref<1x1xf32, #tpu.memory_space<vmem>>, vector<1x1xf32>,
    return
  }
  func.func @transform_0(%arg0: i32) -> (i32, i32) {
    %c0_i32 = arith.constant 0 : i32
    %c0_i32_0 = arith.constant 0 : i32
    return %arg0, %c0_i32 : i32, i32
  }
  func.func @transform_1(%arg0: i32) -> (i32, i32) {
    %c1_i32 = arith.constant 1 : i32
    %c0_i32 = arith.constant 0 : i32
    return %arg0, %c1_i32 : i32, i32
  }
  func.func @transform_2(%arg0: i32) -> (i32, i32) {
    %c0_i32 = arith.constant 0 : i32
    %c0_i32_0 = arith.constant 0 : i32
    return %arg0, %c0_i32 : i32, i32
  }
  func.func @transform_3(%arg0: i32) -> (i32, i32) {
    %c1_i32 = arith.constant 1 : i32
    %c0_i32 = arith.constant 0 : i32
    return %arg0, %c1_i32 : i32, i32
  }
  func.func @transform_4(%arg0: i32) -> (i32, i32) {
    %c0_i32 = arith.constant 0 : i32
    %c0_i32_0 = arith.constant 0 : i32
    %c0_i32_1 = arith.constant 0 : i32
    return %c0_i32, %c0_i32_0 : i32, i32
  }
}

</mosaic_0001>

<llo_original>
// kernel: tpu_custom_call.1
$region0: #{tpu_custom_call.1}
  #allocation0 [shape = 'u32[]', space=smem, size = 0x4, offset = 0x4, fixed_abs, tag = 'smem constant byte address 0x4 - core index']
  #allocation1 [shape = 'u32[144,128]{1,0:T(1,128)}', space=vmem, size = 0x12000, scoped, tag = 'internal scratch']
  %s0 = inlined_call_operand.hbm [shape: f32[8,256], index: 0, kind: input, shape index: {}]
  %s1 = inlined_call_operand.hbm [shape: f32[8,256], index: 1, kind: input, shape index: {}]
  %s2 = inlined_call_operand.hbm [shape: f32[8,256], index: 2, kind: input, shape index: {}]
  %s3 = inlined_call_operand.hbm [shape: f32[8,256], index: 3, kind: input, shape index: {}]
  %s4 = inlined_call_operand.hbm [shape: f32[1,1], index: 4, kind: output, shape index: {}]
  %s5 = sld [smem:[#allocation0]]
  $region46: #{tpu_custom_call.1} parent=0
    _
  %s7 = ssub.s32 1, %s5
  %s8 = scalar_select 0, %s7, %s5
  $region1: #{tpu_custom_call.1} parent=0
    #allocation2 [shape = 'u8[4096]{0}', space=vmem, size = 0x1000, scoped, tag = 'input window, operand 0, single buffered']
    #allocation3 [shape = 's32[1]{0}', space=sflag, size = 0x4, scoped, tag = 'scoped memory for tpu_custom_call.1']
    #allocation4 [shape = 's32[1]{0}', space=sflag, size = 0x4, scoped, tag = 'scoped memory for tpu_custom_call.1']
    #allocation5 [shape = 'u8[4096]{0}', space=vmem, size = 0x1000, scoped, tag = 'input window, operand 1, single buffered']
    #allocation6 [shape = 's32[1]{0}', space=sflag, size = 0x4, scoped, tag = 'scoped memory for tpu_custom_call.1']
    #allocation7 [shape = 'u8[4096]{0}', space=vmem, size = 0x1000, scoped, tag = 'input window, operand 2, single buffered']
    #allocation8 [shape = 'u8[4096]{0}', space=vmem, size = 0x1000, scoped, tag = 'input window, operand 3, single buffered']
    #allocation9 [shape = 's32[1]{0}', space=sflag, size = 0x4, scoped, tag = 'scoped memory for tpu_custom_call.1']
    #allocation10 [shape = 'u8[512]{0}', space=vmem, size = 0x400, scoped, tag = 'output window, operand 0, single buffered']
    %9 = vsyncpa [#allocation3], 0
    %10 = vsyncpa [#allocation6], 0
    %11 = vsyncpa [#allocation9], 0
    %12 = vsyncpa [#allocation4], 0
    // Predicated region
    $region2: #{tpu_custom_call.1} parent=1 // pred_check
      _
    $region3: #{tpu_custom_call.1} parent=1 // pred_check_branch
      %14 = sbr.rel (0) target = $region5
    $region4: #{tpu_custom_call.1} parent=1 // pred_region
      %s16 = ssub.s32 128, 128
      %17 = vsyncadd [#allocation3], %s16
      %s19 = sshll.u32 [#allocation2], 4
      %s20 = int_to_ptr.vmem [resolvable:$true] %s19
      %22 = dma.hbm_to_vmem [thread:$0]  %s0, 128, %s20, [#allocation3]
    $region5: #{tpu_custom_call.1} parent=1 // pred_fallthru
      _
    // Predicated region
    $region6: #{tpu_custom_call.1} parent=1 // pred_check
      _
    $region7: #{tpu_custom_call.1} parent=1 // pred_check_branch
      %24 = sbr.rel (0) target = $region9
    $region8: #{tpu_custom_call.1} parent=1 // pred_region
      %s26 = ssub.s32 128, 128
      %27 = vsyncadd [#allocation6], %s26
      %s28 = scalar_lea.hbm %s1, 128
      %s30 = sshll.u32 [#allocation5], 4
      %s31 = int_to_ptr.vmem [resolvable:$true] %s30
      %33 = dma.hbm_to_vmem [thread:$0]  %s28, 128, %s31, [#allocation6]
    $region9: #{tpu_custom_call.1} parent=1 // pred_fallthru
      _
    // Predicated region
    $region10: #{tpu_custom_call.1} parent=1 // pred_check
      _
    $region11: #{tpu_custom_call.1} parent=1 // pred_check_branch
      %35 = sbr.rel (0) target = $region13
    $region12: #{tpu_custom_call.1} parent=1 // pred_region
      %s37 = ssub.s32 128, 128
      %38 = vsyncadd [#allocation6], %s37
      %s40 = sshll.u32 [#allocation7], 4
      %s41 = int_to_ptr.vmem [resolvable:$true] %s40
      %43 = dma.hbm_to_vmem [thread:$0]  %s2, 128, %s41, [#allocation6]
    $region13: #{tpu_custom_call.1} parent=1 // pred_fallthru
      _
    // Predicated region
    $region14: #{tpu_custom_call.1} parent=1 // pred_check
      _
    $region15: #{tpu_custom_call.1} parent=1 // pred_check_branch
      %45 = sbr.rel (0) target = $region17
    $region16: #{tpu_custom_call.1} parent=1 // pred_region
      %s47 = ssub.s32 128, 128
      %48 = vsyncadd [#allocation9], %s47
      %s49 = scalar_lea.hbm %s3, 128
      %s51 = sshll.u32 [#allocation8], 4
      %s52 = int_to_ptr.vmem [resolvable:$true] %s51
      %54 = dma.hbm_to_vmem [thread:$0]  %s49, 128, %s52, [#allocation9]
    $region17: #{tpu_custom_call.1} parent=1 // pred_fallthru
      _
    // Predicated region
    $region18: #{tpu_custom_call.1} parent=1 // pred_check
      _
    $region19: #{tpu_custom_call.1} parent=1 // pred_check_branch
      %56 = sbr.rel (0) target = $region21
    $region20: #{tpu_custom_call.1} parent=1 // pred_region
      %57 = dma.done [#allocation3], 128
    $region21: #{tpu_custom_call.1} parent=1 // pred_fallthru
      _
    // Predicated region
    $region22: #{tpu_custom_call.1} parent=1 // pred_check
      _
    $region23: #{tpu_custom_call.1} parent=1 // pred_check_branch
      %59 = sbr.rel (0) target = $region25
    $region24: #{tpu_custom_call.1} parent=1 // pred_region
      %60 = dma.done [#allocation6], 128
    $region25: #{tpu_custom_call.1} parent=1 // pred_fallthru
      _
    // Predicated region
    $region26: #{tpu_custom_call.1} parent=1 // pred_check
      _
    $region27: #{tpu_custom_call.1} parent=1 // pred_check_branch
      %62 = sbr.rel (0) target = $region29
    $region28: #{tpu_custom_call.1} parent=1 // pred_region
      %63 = dma.done [#allocation6], 128
    $region29: #{tpu_custom_call.1} parent=1 // pred_fallthru
      _
    // Predicated region
    $region30: #{tpu_custom_call.1} parent=1 // pred_check
      _
    $region31: #{tpu_custom_call.1} parent=1 // pred_check_branch
      %65 = sbr.rel (0) target = $region33
    $region32: #{tpu_custom_call.1} parent=1 // pred_region
      %66 = dma.done [#allocation9], 128
    $region33: #{tpu_custom_call.1} parent=1 // pred_fallthru
      _
    %v67 = vld [vmem:[#allocation2] sm:$0xff]
    %v68 = vld [vmem:[#allocation5] sm:$0xff]
    %v69 = vld [vmem:[#allocation7] sm:$0xff]
    %v70 = vld [vmem:[#allocation8] sm:$0xff]
    %v71 = vlog2.pop %v67
    %v72 = vmul.f32 %v71, 0.6931472
    %v73 = vmul.f32 %v72, 4.3429446
    %v74 = vsub.f32 %v73, %v69
    %v75 = vand.u32 2147483647, %v74
    %v76 = vmin.f32 %v75, 1.0
    %v77 = vmul.f32 %v76, 0.5
    %v78 = vsub.f32 %v75, %v77
    %v79 = vmul.f32 %v76, %v78
    %v80 = vsub.f32 %v68, %v70
    %v81 = vand.u32 2147483647, %v80
    %vm82 = vcmp.le.f32.partialorder %v81, 0.7853982
    %vm83 = vcmp.lt.s32.totalorder %v80, 0
    %v84 = vand.u32 %v80, 2139095040
    %v85 = vshrl.u32 %v84, 23
    %v86 = vsub.s32 %v85, 127
    %v87 = vand.u32 2147483647, %v80
    %v88 = vand.u32 %v87, 8388607
    %v89 = vor.u32 %v88, 8388608
    %v90 = vsub.s32 0, %v89
    %v91 = vadd.s32 %v86, 1
    %vm92 = vcmp.gt.s32.totalorder %v91, 0
    %v93 = vsel %vm92, %v91, 0
    %v94 = vshrl.u32 %v93, 5
    %v95 = vand.u32 %v93, 31
    %v96 = vsub.s32 32, %v95
    %v97 = vshrl.u32 683565275, %v96
    %v98 = vshll.u32 683565275, %v95
    %v99 = vshrl.u32 2475754826, %v96
    %v100 = vor.u32 %v98, %v99
    %v101 = vshll.u32 2475754826, %v95
    %v102 = vshrl.u32 2131351028, %v96
    %v103 = vor.u32 %v101, %v102
    %v104 = vshll.u32 2131351028, %v95
    %v105 = vshrl.u32 2102212464, %v96
    %v106 = vor.u32 %v104, %v105
    %v107 = vshll.u32 2102212464, %v95
    %v108 = vshrl.u32 920167782, %v96
    %v109 = vor.u32 %v107, %v108
    %v110 = vshll.u32 920167782, %v95
    %v111 = vshrl.u32 1326507024, %v96
    %v112 = vor.u32 %v110, %v111
    %vm113 = vcmp.lt.s32.totalorder %v94, 1
    %vm114 = vcmp.lt.s32.totalorder %v94, 2
    %vm115 = vcmp.lt.s32.totalorder %v94, 3
    %vm116 = vcmp.lt.s32.totalorder %v94, 4
    %v117 = vsel %vm113, %v97, %v100
    %v118 = vsel %vm116, %v106, 2102212464
    %v119 = vsel %vm115, %v103, %v118
    %v120 = vsel %vm114, %v117, %v119
    %v121 = vsel %vm113, %v100, %v103
    %v122 = vsel %vm116, %v109, 920167782
    %v123 = vsel %vm115, %v106, %v122
    %v124 = vsel %vm114, %v121, %v123
    %v125 = vsel %vm113, %v103, %v106
    %v126 = vsel %vm116, %v112, 1326507024
    %v127 = vsel %vm115, %v109, %v126
    %v128 = vsel %vm114, %v125, %v127
    %v129 = vshll.u32 %v89, 8
    %v130 = vmul.u32.u64.compose %v129, %v128
    %v131 = vextract.low.u32 %v130
    %v132 = vextract.high.u32 %v130
    %v133 = vmul.u32.u64.compose %v129, %v124
    %v134 = vextract.low.u32 %v133
    %v135 = vextract.high.u32 %v133
    %v136 = vmul.u32 %v129, %v120
    %v137 = vadd.s32 %v132, %v134
    %vm138 = vc.u32 %v132, %v134
    %v139 = vadd.s32 %v135, 1
    %v140 = vsel %vm138, %v139, %v135
    %v141 = vadd.s32 %v136, %v140
    %v142 = vadd.s32 %v141, 536870912
    %v143 = vshrl.u32 %v142, 30
    %v144 = vshll.u32 %v143, 30
    %v145 = vsub.s32 %v141, %v144
    %vm146 = vcmp.lt.s32.totalorder %v145, 0
    %v147 = vsub.s32 0, %v145
    %v148 = vsel %vm146, %v147, %v145
    %v149 = vclz %v148
    %v150 = vsub.s32 %v149, 2
    %vm151 = vcmp.gt.s32.totalorder 0, %v150
    %v152 = vsel %vm151, 0, %v150
    %v153 = vsub.s32 32, %v152
    %v154 = vshll.u32 %v145, %v152
    %v155 = vshrl.u32 %v137, %v153
    %v156 = vor.u32 %v154, %v155
    %v157 = vsub.s32 4294967266, %v152
    %v158 = vadd.s32 %v157, 127
    %v159 = vshll.u32 %v158, 23
    %v160 = vor.u32 4788187, %v159
    %v161 = vand.u32 2147483647, %v160
    %v163 = vcvt.s32.f32 %v156
    %v164 = vmul.f32 %v163, %v161
    %v165 = vxor.u32 %v164, 2147483648
    %v166 = vsel %vm83, %v165, %v164
    %v167 = vsub.s32 4, %v143
    %v168 = vsel %vm83, %v167, %v143
    %v169 = vsel %vm82, %v80, %v166
    %v170 = vsel %vm82, 0, %v168
    %v171 = vcosq.f32.pop %v169
    %v172 = vsinq.f32.pop %v169
    %vm173 = vweird.f32 %v80
    %v174 = vand.u32 %v170, 3
    %vm175 = vcmp.lt.s32.totalorder %v174, 2
    %vm176 = vcmp.eq.s32.totalorder %v174, 0
    %v177 = vxor.u32 %v172, 2147483648
    %v178 = vsel %vm176, %v171, %v177
    %vm179 = vcmp.eq.s32.totalorder %v174, 2
    %v180 = vxor.u32 %v171, 2147483648
    %v181 = vsel %vm179, %v180, %v172
    %v182 = vsel %vm175, %v178, %v181
    %v183 = vsel %vm173, nan, %v182
    %v184 = vsub.f32 1.0, %v183
    %v185 = vadd.f32 %v79, %v184
    %v186 = vmul.f32 %v185, 0.0009765625
    %v187 = vlaneseq
    %v188 = vand.u32 %v187, 127
    %vm189 = vcmp.lt.s32.totalorder %v188, 126
    %190 = vrot.lane.b32.xlu0 %v73, 126
    %v191 = vpop.permute.xlu0 %190
    %192 = vrot.lane.b32.xlu0 %v73, 127
    %v193 = vpop.permute.xlu0 %192
    %v194 = vmul.f32 %v193, 2.0
    %v195 = vsub.f32 %v191, %v194
    %v196 = vadd.f32 %v195, %v73
    %v197 = vand.u32 2147483647, %v196
    %v198 = vmul.f32 %v197, 9.920635e-05
    %199 = vrot.lane.b32.xlu0 %v68, 127
    %v200 = vpop.permute.xlu0 %199
    %v201 = vsub.f32 %v200, %v68
    %v202 = vand.u32 2147483647, %v201
    %vm203 = vcmp.gt.f32.partialorder %v202, 3.1415927
    %v204 = vsub.f32 6.2831855, %v202
    %v205 = vsel %vm203, %v204, %v201
    %206 = vrot.lane.b32.xlu0 %v205, 127
    %v207 = vpop.permute.xlu0 %206
    %v208 = vsub.f32 %v207, %v205
    %v209 = vand.u32 2147483647, %v208
    %vm210 = vcmp.gt.f32.partialorder %v209, 3.1415927
    %v211 = vsub.f32 6.2831855, %v209
    %v212 = vsel %vm210, %v211, %v208
    %v213 = vand.u32 2147483647, %v212
    %v214 = vmul.f32 %v213, 4.9603175e-05
    %v215 = vadd.f32 %v198, %v214
    %v216 = vsel %vm189, 1, 0
    %vm217 = vcmp.eq.s32.totalorder %v216, 1
    %v218 = vsel %vm217, %v215, 0.0
    %v219 = vadd.f32 %v186, %v218
    %220 = vadd.xlane.f32.xlu0 %v219
    %v221 = vpop.xlane.xlu0 %220
    %v222 = vrot.slane %v221, 4
    %v223 = vadd.f32 %v221, %v222
    %v224 = vrot.slane %v223, 2
    %v225 = vadd.f32 %v223, %v224
    %v226 = vrot.slane %v225, 1
    %v227 = vadd.f32 %v225, %v226
    %s228 = vtos %v227
    %v229 = vstv %s228
    %p230 = scmp.eq.s32.totalorder 0, 0
    // Predicated region
    $region34: #{tpu_custom_call.1} parent=1 // pred_check
      %p231 = pneg %p230
    $region35: #{tpu_custom_call.1} parent=1 // pred_check_branch
      %233 = sbr.rel (%p231) target = $region37
    $region36: #{tpu_custom_call.1} parent=1 // pred_region
      %vm234 = vcmask 0
      %235 = vst.msk [vmem:[#allocation10] sm:$0x1] %vm234, 0.0
    $region37: #{tpu_custom_call.1} parent=1 // pred_fallthru
      _
    %v236 = vld [vmem:[#allocation10] sm:$0x1]
    %v237 = vadd.f32 %v236, %v229
    %vm238 = vcmask 0
    %239 = vst.msk [vmem:[#allocation10] sm:$0x1] %vm238, %v237
    // Predicated region
    $region38: #{tpu_custom_call.1} parent=1 // pred_check
      _
    $region39: #{tpu_custom_call.1} parent=1 // pred_check_branch
      %241 = sbr.rel (0) target = $region41
    $region40: #{tpu_custom_call.1} parent=1 // pred_region
      %s243 = ssub.s32 16, 16
      %244 = vsyncadd [#allocation4], %s243
      %s246 = sshll.u32 [#allocation10], 4
      %s247 = int_to_ptr.vmem [resolvable:$true] %s246
      %249 = dma.vmem_to_hbm [thread:$0]  %s247, 16, %s4, [#allocation4]
    $region41: #{tpu_custom_call.1} parent=1 // pred_fallthru
      _
    // Predicated region
    $region42: #{tpu_custom_call.1} parent=1 // pred_check
      _
    $region43: #{tpu_custom_call.1} parent=1 // pred_check_branch
      %251 = sbr.rel (0) target = $region45
    $region44: #{tpu_custom_call.1} parent=1 // pred_region
      %252 = dma.done [#allocation4], 16
    $region45: #{tpu_custom_call.1} parent=1 // pred_fallthru
      _
    %253 = vsyncpa [#allocation3], 1
    %254 = vsyncpa [#allocation6], 1
    %255 = vsyncpa [#allocation9], 1
    %256 = vsyncpa [#allocation4], 1

</llo_original>
